<compile_context>
chip_gen: v7x
topology: tpu7x:2x2x1
jax: 0.10.0
libtpu: 0.0.40
codegen_flags: <defaults>
</compile_context>

<pallas_src>
import functools
import math

import jax
import jax.numpy as jnp
from jax.experimental import pallas as pl
from jax.experimental.pallas import tpu as pltpu

_VMEM_LIMIT = 48 * 1024 * 1024  # above default scoped limit, below physical on all gens


def _layer_norm(v, gamma, beta, eps=1e-5):
    mu = jnp.mean(v, axis=-1, keepdims=True)
    var = jnp.mean((v - mu) ** 2, axis=-1, keepdims=True)
    return (v - mu) * jax.lax.rsqrt(var + eps) * gamma + beta


# ---------------- kernel 1: LN0 + fused QKV projection ----------------
def ln_qkv_kernel(x_ref, g0_ref, b0_ref, wqkv_ref,
                  q_ref, k_ref, v_ref, *, heads, head_dim, scale):
    x = x_ref[0]                                     # (tq, E) f32
    E = x.shape[-1]
    h = _layer_norm(x, g0_ref[...], b0_ref[...])     # f32 LN
    qkv = jnp.dot(h.astype(jnp.bfloat16), wqkv_ref[...],
                  preferred_element_type=jnp.float32)  # (tq, 3E), f32 accumulate
    # Split heads by lane-slicing (no transposes); fold softmax scale into q.
    for hh in range(heads):
        lo = hh * head_dim
        q_ref[0, hh] = (qkv[:, lo:lo + head_dim] * scale).astype(q_ref.dtype)
        k_ref[0, hh] = qkv[:, E + lo:E + lo + head_dim].astype(k_ref.dtype)
        v_ref[0, hh] = qkv[:, 2 * E + lo:2 * E + lo + head_dim].astype(v_ref.dtype)


# ---------------- kernel 2: flash attention (online softmax over KV tiles) ----------------
def flash_attn_kernel(q_ref, k_ref, v_ref, mask_ref, o_ref,
                      m_sc, l_sc, acc_sc, *, heads):
    ki = pl.program_id(2)

    @pl.when(ki == 0)
    def _():
        m_sc[...] = jnp.full(m_sc.shape, -1e30, jnp.float32)
        l_sc[...] = jnp.zeros(l_sc.shape, jnp.float32)
        acc_sc[...] = jnp.zeros(acc_sc.shape, jnp.float32)

    q = q_ref[0]        # (H, tq, hd) bf16 (pre-scaled by 1/sqrt(hd))
    k = k_ref[0]        # (H, tk, hd) bf16
    v = v_ref[0]        # (H, tk, hd) bf16
    mask = mask_ref[0]  # (tq, tk) f32 additive mask

    s = jnp.einsum('htd,hsd->hts', q, k,
                   preferred_element_type=jnp.float32)   # (H, tq, tk) f32
    s = s + mask[None, :, :]

    m_prev = m_sc[...]                                    # (H, tq, 1)
    m_new = jnp.maximum(m_prev, jnp.max(s, axis=-1, keepdims=True))
    alpha = jnp.exp(m_prev - m_new)                       # (H, tq, 1)
    p = jnp.exp(s - m_new)                                # (H, tq, tk) f32
    l_sc[...] = alpha * l_sc[...] + jnp.sum(p, axis=-1, keepdims=True)
    acc_sc[...] = alpha * acc_sc[...] + jnp.einsum(
        'hts,hsd->htd', p.astype(v.dtype), v,
        preferred_element_type=jnp.float32)               # (H, tq, hd) f32
    m_sc[...] = m_new

    @pl.when(ki == pl.num_programs(2) - 1)
    def _():
        inv_l = pl.reciprocal(l_sc[...], approx=True)     # EUP slot, ~free
        out = acc_sc[...] * inv_l                         # (H, tq, hd) f32
        # Merge heads along lanes -> a single lane-dense (tq, E) store.
        merged = jnp.concatenate([out[hh] for hh in range(heads)], axis=-1)
        o_ref[0] = merged.astype(o_ref.dtype)


# ---------------- kernel 3: out-proj + residual + LN1 + MLP + residual ----------------
def out_mlp_kernel(x_ref, attn_ref, wo_ref, g1_ref, b1_ref,
                   w1_ref, bb1_ref, w2_ref, bb2_ref, o_ref):
    x = x_ref[0]                                          # (tq, E) f32
    a = jnp.dot(attn_ref[0], wo_ref[...],
                preferred_element_type=jnp.float32)       # bf16 x bf16 -> f32
    x1 = x + a
    h2 = _layer_norm(x1, g1_ref[...], b1_ref[...])
    # TODO(synk): for very large E on v7x, tile the 3E hidden dim with an extra
    # "arbitrary" grid axis (and single-buffer the weight specs) so the (tq, 3E)
    # intermediate and w1/w2 slabs are chunked under the 64 MiB VMEM budget.
    m = jnp.dot(h2.astype(jnp.bfloat16), w1_ref[...],
                preferred_element_type=jnp.float32) + bb1_ref[...]
    m = jax.nn.gelu(m, approximate=False)   # exact GELU, matches torch.nn.GELU()
    m = jnp.dot(m.astype(jnp.bfloat16), w2_ref[...],
                preferred_element_type=jnp.float32) + bb2_ref[...]
    o_ref[0] = (x1 + m).astype(o_ref.dtype)


def transformer_encoder_block(x, mask, params, *, heads, q_tile=256, kv_tile=256):
    """x: (B, T, E) f32; mask: (B, 1, T, T) additive float mask."""
    B, T, E = x.shape
    assert E % heads == 0
    hd = E // heads
    (g0, b0, g1, b1, w_qkv, w_o, w1, bb1, w2, bb2) = params

    tq = min(T, q_tile)
    tk = min(T, kv_tile)
    assert T % tq == 0 and T % tk == 0
    n_q, n_k = T // tq, T // tk

    bf16 = jnp.bfloat16
    w_qkv_b = w_qkv.astype(bf16)
    w_o_b = w_o.astype(bf16)
    w1_b = w1.astype(bf16)
    w2_b = w2.astype(bf16)
    mask2 = mask.reshape(B, T, T)  # drop broadcast head axis

    def full(shape):
        return pl.BlockSpec(shape, lambda *_: (0,) * len(shape))

    # ---- kernel 1: LN0 + QKV projection -> q, k, v in (B, H, T, hd) bf16 ----
    q, k, v = pl.pallas_call(
        functools.partial(ln_qkv_kernel, heads=heads, head_dim=hd,
                          scale=1.0 / math.sqrt(hd)),
        out_shape=[jax.ShapeDtypeStruct((B, heads, T, hd), bf16)] * 3,
        grid_spec=pltpu.PrefetchScalarGridSpec(
            num_scalar_prefetch=0,
            grid=(B, n_q),
            in_specs=[
                pl.BlockSpec((1, tq, E), lambda b, i: (b, i, 0)),   # x
                full((1, E)), full((1, E)),                         # ln0 gamma/beta
                full((E, 3 * E)),                                   # w_qkv (bf16)
            ],
            out_specs=[pl.BlockSpec((1, heads, tq, hd),
                                    lambda b, i: (b, 0, i, 0))] * 3,
        ),
        compiler_params=pltpu.CompilerParams(
            dimension_semantics=("parallel", "parallel"),
            vmem_limit_bytes=_VMEM_LIMIT),
    )(x, g0, b0, w_qkv_b)

    # ---- kernel 2: flash attention -> attn in (B, T, E) bf16 ----
    attn = pl.pallas_call(
        functools.partial(flash_attn_kernel, heads=heads),
        out_shape=jax.ShapeDtypeStruct((B, T, E), bf16),
        grid_spec=pltpu.PrefetchScalarGridSpec(
            num_scalar_prefetch=0,
            grid=(B, n_q, n_k),
            in_specs=[
                pl.BlockSpec((1, heads, tq, hd), lambda b, i, j: (b, 0, i, 0)),
                pl.BlockSpec((1, heads, tk, hd), lambda b, i, j: (b, 0, j, 0)),
                pl.BlockSpec((1, heads, tk, hd), lambda b, i, j: (b, 0, j, 0)),
                pl.BlockSpec((1, tq, tk), lambda b, i, j: (b, i, j)),
            ],
            out_specs=pl.BlockSpec((1, tq, E), lambda b, i, j: (b, i, 0)),
            scratch_shapes=[
                pltpu.VMEM((heads, tq, 1), jnp.float32),   # running max
                pltpu.VMEM((heads, tq, 1), jnp.float32),   # running denominator
                pltpu.VMEM((heads, tq, hd), jnp.float32),  # running accumulator
            ],
        ),
        compiler_params=pltpu.CompilerParams(
            dimension_semantics=("parallel", "parallel", "arbitrary"),
            vmem_limit_bytes=_VMEM_LIMIT),
    )(q, k, v, mask2)

    # ---- kernel 3: out-proj + residual + LN1 + MLP + residual ----
    out = pl.pallas_call(
        out_mlp_kernel,
        out_shape=jax.ShapeDtypeStruct((B, T, E), x.dtype),
        grid_spec=pltpu.PrefetchScalarGridSpec(
            num_scalar_prefetch=0,
            grid=(B, n_q),
            in_specs=[
                pl.BlockSpec((1, tq, E), lambda b, i: (b, i, 0)),   # x (residual)
                pl.BlockSpec((1, tq, E), lambda b, i: (b, i, 0)),   # attn (bf16)
                full((E, E)),                                       # w_o (bf16)
                full((1, E)), full((1, E)),                         # ln1 gamma/beta
                full((E, 3 * E)), full((1, 3 * E)),                 # mlp w1 (bf16), b1
                full((3 * E, E)), full((1, E)),                     # mlp w2 (bf16), b2
            ],
            out_specs=pl.BlockSpec((1, tq, E), lambda b, i: (b, i, 0)),
        ),
        compiler_params=pltpu.CompilerParams(
            dimension_semantics=("parallel", "parallel"),
            vmem_limit_bytes=_VMEM_LIMIT),
    )(x, attn, w_o_b, g1, b1, w1_b, bb1, w2_b, bb2)
    return out


# ---------------- pure-JAX f32 reference (for correctness check) ----------------
def reference_block(x, mask, params, *, heads):
    (g0, b0, g1, b1, w_qkv, w_o, w1, bb1, w2, bb2) = params
    B, T, E = x.shape
    hd = E // heads

    def ln(v, g, bb):
        mu = jnp.mean(v, axis=-1, keepdims=True)
        var = jnp.mean((v - mu) ** 2, axis=-1, keepdims=True)
        return (v - mu) / jnp.sqrt(var + 1e-5) * g + bb

    h = ln(x, g0, b0)
    qkv = h @ w_qkv                                   # (B, T, 3E)
    qkv = qkv.reshape(B, T, 3, heads, hd)             # (b t (n h e))
    q, k, v = [jnp.transpose(qkv[:, :, i], (0, 2, 1, 3)) for i in range(3)]  # (B,H,T,hd)
    s = jnp.einsum('bhtd,bhsd->bhts', q, k) / jnp.sqrt(jnp.float32(hd)) + mask
    p = jax.nn.softmax(s, axis=-1)
    a = jnp.einsum('bhts,bhsd->bhtd', p, v)
    a = jnp.transpose(a, (0, 2, 1, 3)).reshape(B, T, E) @ w_o
    x = x + a
    h2 = ln(x, g1, b1)
    m = jax.nn.gelu(h2 @ w1 + bb1, approximate=False) @ w2 + bb2
    return x + m


if __name__ == "__main__":
    B, T, E, H = 2, 8, 32, 4

    key = jax.random.PRNGKey(0)
    ks = jax.random.split(key, 11)

    g0 = 1.0 + 0.1 * jax.random.normal(ks[0], (1, E), jnp.float32)
    b0 = 0.1 * jax.random.normal(ks[1], (1, E), jnp.float32)
    g1 = 1.0 + 0.1 * jax.random.normal(ks[2], (1, E), jnp.float32)
    b1 = 0.1 * jax.random.normal(ks[3], (1, E), jnp.float32)
    w_qkv = 0.05 * jax.random.normal(ks[4], (E, 3 * E), jnp.float32)
    w_o = 0.05 * jax.random.normal(ks[5], (E, E), jnp.float32)
    w1 = 0.05 * jax.random.normal(ks[6], (E, 3 * E), jnp.float32)
    bb1 = 0.05 * jax.random.normal(ks[7], (1, 3 * E), jnp.float32)
    w2 = 0.05 * jax.random.normal(ks[8], (3 * E, E), jnp.float32)
    bb2 = 0.05 * jax.random.normal(ks[9], (1, E), jnp.float32)
    params = (g0, b0, g1, b1, w_qkv, w_o, w1, bb1, w2, bb2)

    x = jax.random.normal(ks[10], (B, T, E), jnp.float32)

    # causal additive float mask, broadcast over heads: (B, 1, T, T)
    causal = jnp.tril(jnp.ones((T, T), jnp.bool_))
    mask = jnp.where(causal, 0.0, -1e9).astype(jnp.float32)
    mask = jnp.broadcast_to(mask[None, None], (B, 1, T, T))

    out = transformer_encoder_block(x, mask, params, heads=H)
    out = jax.block_until_ready(out)

    ref = reference_block(x, mask, params, heads=H)
    # bf16 MXU matmuls (f32 accumulation) vs f32 reference -> loose tolerance.
    assert jnp.allclose(out, ref, atol=5e-2, rtol=5e-2), (
        float(jnp.max(jnp.abs(out - ref))))

    print("KERNEL_OK")
</pallas_src>

<mosaic_0001>
module attributes {stable_mosaic.version = 11 : i64} {
  func.func @ln_qkv_kernel(%arg0: i32, %arg1: i32, %arg2: memref<1x8x32xf32, #tpu.memory_space<vmem>>, %arg3: memref<1x32xf32, #tpu.memory_space<vmem>>, %arg4: memref<1x32xf32, #tpu.memory_space<vmem>>, %arg5: memref<32x96xbf16, #tpu.memory_space<vmem>>, %arg6: memref<1x4x8x8xbf16, #tpu.memory_space<vmem>>, %arg7: memref<1x4x8x8xbf16, #tpu.memory_space<vmem>>, %arg8: memref<1x4x8x8xbf16, #tpu.memory_space<vmem>>) attributes {dimension_semantics = [#tpu.dimension_semantics<parallel>, #tpu.dimension_semantics<parallel>], iteration_bounds = array<i64: 2, 1>, scalar_prefetch = 0 : i64, scratch_operands = 0 : i64, tpu.core_type = #tpu.core_type<tc>, window_params = [{transform_indices = @transform_0, window_bounds = array<i64: 1, 8, 32>}, {pipeline_mode = #tpu.pipeline_mode<synchronous>, transform_indices = @transform_1, window_bounds = array<i64: 1, 32>}, {pipeline_mode = #tpu.pipeline_mode<synchronous>, transform_indices = @transform_2, window_bounds = array<i64: 1, 32>}, {pipeline_mode = #tpu.pipeline_mode<synchronous>, transform_indices = @transform_3, window_bounds = array<i64: 32, 96>}, {transform_indices = @transform_4, window_bounds = array<i64: 1, 4, 8, 8>}, {transform_indices = @transform_5, window_bounds = array<i64: 1, 4, 8, 8>}, {transform_indices = @transform_6, window_bounds = array<i64: 1, 4, 8, 8>}]} {
    %c0 = arith.constant 0 : index
    %c0_0 = arith.constant 0 : index
    %c0_1 = arith.constant 0 : index
    %0 = vector.load %arg2[%c0, %c0_0, %c0_1] : memref<1x8x32xf32, #tpu.memory_space<vmem>>, vector<1x8x32xf32>
    %1 = vector.shape_cast %0 : vector<1x8x32xf32> to vector<8x32xf32>
    %c0_2 = arith.constant 0 : index
    %c0_3 = arith.constant 0 : index
    %2 = vector.load %arg3[%c0_2, %c0_3] : memref<1x32xf32, #tpu.memory_space<vmem>>, vector<1x32xf32>
    %c0_4 = arith.constant 0 : index
    %c0_5 = arith.constant 0 : index
    %3 = vector.load %arg4[%c0_4, %c0_5] : memref<1x32xf32, #tpu.memory_space<vmem>>, vector<1x32xf32>
    %cst = arith.constant dense<0.000000e+00> : vector<8xf32>
    %4 = vector.multi_reduction <add>, %1, %cst [1] : vector<8x32xf32> to vector<8xf32>
    %5 = vector.shape_cast %4 : vector<8xf32> to vector<8x1xf32>
    %cst_6 = arith.constant 3.200000e+01 : f32
    %6 = vector.broadcast %cst_6 : f32 to vector<8x1xf32>
    %7 = arith.divf %5, %6 : vector<8x1xf32>
    %8 = vector.broadcast %7 : vector<8x1xf32> to vector<8x32xf32>
    %9 = arith.subf %1, %8 : vector<8x32xf32>
    %10 = arith.mulf %9, %9 : vector<8x32xf32>
    %cst_7 = arith.constant dense<0.000000e+00> : vector<8xf32>
    %11 = vector.multi_reduction <add>, %10, %cst_7 [1] : vector<8x32xf32> to vector<8xf32>
    %12 = vector.shape_cast %11 : vector<8xf32> to vector<8x1xf32>
    %cst_8 = arith.constant 3.200000e+01 : f32
    %13 = vector.broadcast %cst_8 : f32 to vector<8x1xf32>
    %14 = arith.divf %12, %13 : vector<8x1xf32>
    %15 = vector.broadcast %7 : vector<8x1xf32> to vector<8x32xf32>
    %16 = arith.subf %1, %15 : vector<8x32xf32>
    %cst_9 = arith.constant 9.99999974E-6 : f32
    %17 = vector.broadcast %cst_9 : f32 to vector<8x1xf32>
    %18 = arith.addf %14, %17 : vector<8x1xf32>
    %19 = math.rsqrt %18 : vector<8x1xf32>
    %20 = vector.broadcast %19 : vector<8x1xf32> to vector<8x32xf32>
    %21 = arith.mulf %16, %20 : vector<8x32xf32>
    %22 = vector.broadcast %2 : vector<1x32xf32> to vector<8x32xf32>
    %23 = arith.mulf %21, %22 : vector<8x32xf32>
    %24 = vector.broadcast %3 : vector<1x32xf32> to vector<8x32xf32>
    %25 = arith.addf %23, %24 : vector<8x32xf32>
    %26 = arith.truncf %25 : vector<8x32xf32> to vector<8x32xbf16>
    %c0_10 = arith.constant 0 : index
    %c0_11 = arith.constant 0 : index
    %27 = vector.load %arg5[%c0_10, %c0_11] : memref<32x96xbf16, #tpu.memory_space<vmem>>, vector<32x96xbf16>
    %cst_12 = arith.constant dense<0.000000e+00> : vector<8x96xf32>
    %28 = tpu.matmul %26, %27, %cst_12 {dimension_numbers = #tpu.dot_dimension_numbers<[1], [0], [0], [1], [0, 0, 1, 1], [], []>} : vector<8x32xbf16>, vector<32x96xbf16>, vector<8x96xf32> -> vector<8x96xf32>
    %29 = vector.extract_strided_slice %28 {offsets = [0, 0], sizes = [8, 8], strides = [1, 1]} : vector<8x96xf32> to vector<8x8xf32>
    %cst_13 = arith.constant 0.353553385 : f32
    %30 = vector.broadcast %cst_13 : f32 to vector<8x8xf32>
    %31 = arith.mulf %29, %30 : vector<8x8xf32>
    %32 = arith.truncf %31 : vector<8x8xf32> to vector<8x8xbf16>
    %c0_14 = arith.constant 0 : index
    %c0_15 = arith.constant 0 : index
    %c0_16 = arith.constant 0 : index
    %c0_17 = arith.constant 0 : index
    %33 = vector.load %arg6[%c0_14, %c0_15, %c0_16, %c0_17] : memref<1x4x8x8xbf16, #tpu.memory_space<vmem>>, vector<1x1x8x8xbf16>
    %34 = vector.shape_cast %33 : vector<1x1x8x8xbf16> to vector<8x8xbf16>
    %35 = vector.shape_cast %32 : vector<8x8xbf16> to vector<1x1x8x8xbf16>
    tpu.vector_store %arg6[%c0_14, %c0_15, %c0_16, %c0_17], %35 {strides = array<i32>} : memref<1x4x8x8xbf16, #tpu.memory_space<vmem>>, vector<1x1x8x8xbf16>,
    %36 = vector.extract_strided_slice %28 {offsets = [0, 32], sizes = [8, 8], strides = [1, 1]} : vector<8x96xf32> to vector<8x8xf32>
    %37 = arith.truncf %36 : vector<8x8xf32> to vector<8x8xbf16>
    %c0_18 = arith.constant 0 : index
    %c0_19 = arith.constant 0 : index
    %c0_20 = arith.constant 0 : index
    %c0_21 = arith.constant 0 : index
    %38 = vector.load %arg7[%c0_18, %c0_19, %c0_20, %c0_21] : memref<1x4x8x8xbf16, #tpu.memory_space<vmem>>, vector<1x1x8x8xbf16>
    %39 = vector.shape_cast %38 : vector<1x1x8x8xbf16> to vector<8x8xbf16>
    %40 = vector.shape_cast %37 : vector<8x8xbf16> to vector<1x1x8x8xbf16>
    tpu.vector_store %arg7[%c0_18, %c0_19, %c0_20, %c0_21], %40 {strides = array<i32>} : memref<1x4x8x8xbf16, #tpu.memory_space<vmem>>, vector<1x1x8x8xbf16>,
    %41 = vector.extract_strided_slice %28 {offsets = [0, 64], sizes = [8, 8], strides = [1, 1]} : vector<8x96xf32> to vector<8x8xf32>
    %42 = arith.truncf %41 : vector<8x8xf32> to vector<8x8xbf16>
    %c0_22 = arith.constant 0 : index
    %c0_23 = arith.constant 0 : index
    %c0_24 = arith.constant 0 : index
    %c0_25 = arith.constant 0 : index
    %43 = vector.load %arg8[%c0_22, %c0_23, %c0_24, %c0_25] : memref<1x4x8x8xbf16, #tpu.memory_space<vmem>>, vector<1x1x8x8xbf16>
    %44 = vector.shape_cast %43 : vector<1x1x8x8xbf16> to vector<8x8xbf16>
    %45 = vector.shape_cast %42 : vector<8x8xbf16> to vector<1x1x8x8xbf16>
    tpu.vector_store %arg8[%c0_22, %c0_23, %c0_24, %c0_25], %45 {strides = array<i32>} : memref<1x4x8x8xbf16, #tpu.memory_space<vmem>>, vector<1x1x8x8xbf16>,
    %46 = vector.extract_strided_slice %28 {offsets = [0, 8], sizes = [8, 8], strides = [1, 1]} : vector<8x96xf32> to vector<8x8xf32>
    %cst_26 = arith.constant 0.353553385 : f32
    %47 = vector.broadcast %cst_26 : f32 to vector<8x8xf32>
    %48 = arith.mulf %46, %47 : vector<8x8xf32>
    %49 = arith.truncf %48 : vector<8x8xf32> to vector<8x8xbf16>
    %c0_27 = arith.constant 0 : index
    %c1 = arith.constant 1 : index
    %c0_28 = arith.constant 0 : index
    %c0_29 = arith.constant 0 : index
    %50 = vector.load %arg6[%c0_27, %c1, %c0_28, %c0_29] : memref<1x4x8x8xbf16, #tpu.memory_space<vmem>>, vector<1x1x8x8xbf16>
    %51 = vector.shape_cast %50 : vector<1x1x8x8xbf16> to vector<8x8xbf16>
    %52 = vector.shape_cast %49 : vector<8x8xbf16> to vector<1x1x8x8xbf16>
    tpu.vector_store %arg6[%c0_27, %c1, %c0_28, %c0_29], %52 {strides = array<i32>} : memref<1x4x8x8xbf16, #tpu.memory_space<vmem>>, vector<1x1x8x8xbf16>,
    %53 = vector.extract_strided_slice %28 {offsets = [0, 40], sizes = [8, 8], strides = [1, 1]} : vector<8x96xf32> to vector<8x8xf32>
    %54 = arith.truncf %53 : vector<8x8xf32> to vector<8x8xbf16>
    %c0_30 = arith.constant 0 : index
    %c1_31 = arith.constant 1 : index
    %c0_32 = arith.constant 0 : index
    %c0_33 = arith.constant 0 : index
    %55 = vector.load %arg7[%c0_30, %c1_31, %c0_32, %c0_33] : memref<1x4x8x8xbf16, #tpu.memory_space<vmem>>, vector<1x1x8x8xbf16>
    %56 = vector.shape_cast %55 : vector<1x1x8x8xbf16> to vector<8x8xbf16>
    %57 = vector.shape_cast %54 : vector<8x8xbf16> to vector<1x1x8x8xbf16>
    tpu.vector_store %arg7[%c0_30, %c1_31, %c0_32, %c0_33], %57 {strides = array<i32>} : memref<1x4x8x8xbf16, #tpu.memory_space<vmem>>, vector<1x1x8x8xbf16>,
    %58 = vector.extract_strided_slice %28 {offsets = [0, 72], sizes = [8, 8], strides = [1, 1]} : vector<8x96xf32> to vector<8x8xf32>
    %59 = arith.truncf %58 : vector<8x8xf32> to vector<8x8xbf16>
    %c0_34 = arith.constant 0 : index
    %c1_35 = arith.constant 1 : index
    %c0_36 = arith.constant 0 : index
    %c0_37 = arith.constant 0 : index
    %60 = vector.load %arg8[%c0_34, %c1_35, %c0_36, %c0_37] : memref<1x4x8x8xbf16, #tpu.memory_space<vmem>>, vector<1x1x8x8xbf16>
    %61 = vector.shape_cast %60 : vector<1x1x8x8xbf16> to vector<8x8xbf16>
    %62 = vector.shape_cast %59 : vector<8x8xbf16> to vector<1x1x8x8xbf16>
    tpu.vector_store %arg8[%c0_34, %c1_35, %c0_36, %c0_37], %62 {strides = array<i32>} : memref<1x4x8x8xbf16, #tpu.memory_space<vmem>>, vector<1x1x8x8xbf16>,
    %63 = vector.extract_strided_slice %28 {offsets = [0, 16], sizes = [8, 8], strides = [1, 1]} : vector<8x96xf32> to vector<8x8xf32>
    %cst_38 = arith.constant 0.353553385 : f32
    %64 = vector.broadcast %cst_38 : f32 to vector<8x8xf32>
    %65 = arith.mulf %63, %64 : vector<8x8xf32>
    %66 = arith.truncf %65 : vector<8x8xf32> to vector<8x8xbf16>
    %c0_39 = arith.constant 0 : index
    %c2 = arith.constant 2 : index
    %c0_40 = arith.constant 0 : index
    %c0_41 = arith.constant 0 : index
    %67 = vector.load %arg6[%c0_39, %c2, %c0_40, %c0_41] : memref<1x4x8x8xbf16, #tpu.memory_space<vmem>>, vector<1x1x8x8xbf16>
    %68 = vector.shape_cast %67 : vector<1x1x8x8xbf16> to vector<8x8xbf16>
    %69 = vector.shape_cast %66 : vector<8x8xbf16> to vector<1x1x8x8xbf16>
    tpu.vector_store %arg6[%c0_39, %c2, %c0_40, %c0_41], %69 {strides = array<i32>} : memref<1x4x8x8xbf16, #tpu.memory_space<vmem>>, vector<1x1x8x8xbf16>,
    %70 = vector.extract_strided_slice %28 {offsets = [0, 48], sizes = [8, 8], strides = [1, 1]} : vector<8x96xf32> to vector<8x8xf32>
    %71 = arith.truncf %70 : vector<8x8xf32> to vector<8x8xbf16>
    %c0_42 = arith.constant 0 : index
    %c2_43 = arith.constant 2 : index
    %c0_44 = arith.constant 0 : index
    %c0_45 = arith.constant 0 : index
    %72 = vector.load %arg7[%c0_42, %c2_43, %c0_44, %c0_45] : memref<1x4x8x8xbf16, #tpu.memory_space<vmem>>, vector<1x1x8x8xbf16>
    %73 = vector.shape_cast %72 : vector<1x1x8x8xbf16> to vector<8x8xbf16>
    %74 = vector.shape_cast %71 : vector<8x8xbf16> to vector<1x1x8x8xbf16>
    tpu.vector_store %arg7[%c0_42, %c2_43, %c0_44, %c0_45], %74 {strides = array<i32>} : memref<1x4x8x8xbf16, #tpu.memory_space<vmem>>, vector<1x1x8x8xbf16>,
    %75 = vector.extract_strided_slice %28 {offsets = [0, 80], sizes = [8, 8], strides = [1, 1]} : vector<8x96xf32> to vector<8x8xf32>
    %76 = arith.truncf %75 : vector<8x8xf32> to vector<8x8xbf16>
    %c0_46 = arith.constant 0 : index
    %c2_47 = arith.constant 2 : index
    %c0_48 = arith.constant 0 : index
    %c0_49 = arith.constant 0 : index
    %77 = vector.load %arg8[%c0_46, %c2_47, %c0_48, %c0_49] : memref<1x4x8x8xbf16, #tpu.memory_space<vmem>>, vector<1x1x8x8xbf16>
    %78 = vector.shape_cast %77 : vector<1x1x8x8xbf16> to vector<8x8xbf16>
    %79 = vector.shape_cast %76 : vector<8x8xbf16> to vector<1x1x8x8xbf16>
    tpu.vector_store %arg8[%c0_46, %c2_47, %c0_48, %c0_49], %79 {strides = array<i32>} : memref<1x4x8x8xbf16, #tpu.memory_space<vmem>>, vector<1x1x8x8xbf16>,
    %80 = vector.extract_strided_slice %28 {offsets = [0, 24], sizes = [8, 8], strides = [1, 1]} : vector<8x96xf32> to vector<8x8xf32>
    %cst_50 = arith.constant 0.353553385 : f32
    %81 = vector.broadcast %cst_50 : f32 to vector<8x8xf32>
    %82 = arith.mulf %80, %81 : vector<8x8xf32>
    %83 = arith.truncf %82 : vector<8x8xf32> to vector<8x8xbf16>
    %c0_51 = arith.constant 0 : index
    %c3 = arith.constant 3 : index
    %c0_52 = arith.constant 0 : index
    %c0_53 = arith.constant 0 : index
    %84 = vector.load %arg6[%c0_51, %c3, %c0_52, %c0_53] : memref<1x4x8x8xbf16, #tpu.memory_space<vmem>>, vector<1x1x8x8xbf16>
    %85 = vector.shape_cast %84 : vector<1x1x8x8xbf16> to vector<8x8xbf16>
    %86 = vector.shape_cast %83 : vector<8x8xbf16> to vector<1x1x8x8xbf16>
    tpu.vector_store %arg6[%c0_51, %c3, %c0_52, %c0_53], %86 {strides = array<i32>} : memref<1x4x8x8xbf16, #tpu.memory_space<vmem>>, vector<1x1x8x8xbf16>,
    %87 = vector.extract_strided_slice %28 {offsets = [0, 56], sizes = [8, 8], strides = [1, 1]} : vector<8x96xf32> to vector<8x8xf32>
    %88 = arith.truncf %87 : vector<8x8xf32> to vector<8x8xbf16>
    %c0_54 = arith.constant 0 : index
    %c3_55 = arith.constant 3 : index
    %c0_56 = arith.constant 0 : index
    %c0_57 = arith.constant 0 : index
    %89 = vector.load %arg7[%c0_54, %c3_55, %c0_56, %c0_57] : memref<1x4x8x8xbf16, #tpu.memory_space<vmem>>, vector<1x1x8x8xbf16>
    %90 = vector.shape_cast %89 : vector<1x1x8x8xbf16> to vector<8x8xbf16>
    %91 = vector.shape_cast %88 : vector<8x8xbf16> to vector<1x1x8x8xbf16>
    tpu.vector_store %arg7[%c0_54, %c3_55, %c0_56, %c0_57], %91 {strides = array<i32>} : memref<1x4x8x8xbf16, #tpu.memory_space<vmem>>, vector<1x1x8x8xbf16>,
    %92 = vector.extract_strided_slice %28 {offsets = [0, 88], sizes = [8, 8], strides = [1, 1]} : vector<8x96xf32> to vector<8x8xf32>
    %93 = arith.truncf %92 : vector<8x8xf32> to vector<8x8xbf16>
    %c0_58 = arith.constant 0 : index
    %c3_59 = arith.constant 3 : index
    %c0_60 = arith.constant 0 : index
    %c0_61 = arith.constant 0 : index
    %94 = vector.load %arg8[%c0_58, %c3_59, %c0_60, %c0_61] : memref<1x4x8x8xbf16, #tpu.memory_space<vmem>>, vector<1x1x8x8xbf16>
    %95 = vector.shape_cast %94 : vector<1x1x8x8xbf16> to vector<8x8xbf16>
    %96 = vector.shape_cast %93 : vector<8x8xbf16> to vector<1x1x8x8xbf16>
    tpu.vector_store %arg8[%c0_58, %c3_59, %c0_60, %c0_61], %96 {strides = array<i32>} : memref<1x4x8x8xbf16, #tpu.memory_space<vmem>>, vector<1x1x8x8xbf16>,
    return
  }
  func.func @transform_0(%arg0: i32, %arg1: i32) -> (i32, i32, i32) {
    %c0_i32 = arith.constant 0 : i32
    %c0_i32_0 = arith.constant 0 : i32
    return %arg0, %arg1, %c0_i32 : i32, i32, i32
  }
  func.func @transform_1(%arg0: i32, %arg1: i32) -> (i32, i32) {
    %c0_i32 = arith.constant 0 : i32
    %c0_i32_0 = arith.constant 0 : i32
    %c0_i32_1 = arith.constant 0 : i32
    return %c0_i32, %c0_i32_0 : i32, i32
  }
  func.func @transform_2(%arg0: i32, %arg1: i32) -> (i32, i32) {
    %c0_i32 = arith.constant 0 : i32
    %c0_i32_0 = arith.constant 0 : i32
    %c0_i32_1 = arith.constant 0 : i32
    return %c0_i32, %c0_i32_0 : i32, i32
  }
  func.func @transform_3(%arg0: i32, %arg1: i32) -> (i32, i32) {
    %c0_i32 = arith.constant 0 : i32
    %c0_i32_0 = arith.constant 0 : i32
    %c0_i32_1 = arith.constant 0 : i32
    return %c0_i32, %c0_i32_0 : i32, i32
  }
  func.func @transform_4(%arg0: i32, %arg1: i32) -> (i32, i32, i32, i32) {
    %c0_i32 = arith.constant 0 : i32
    %c0_i32_0 = arith.constant 0 : i32
    %c0_i32_1 = arith.constant 0 : i32
    return %arg0, %c0_i32, %arg1, %c0_i32_0 : i32, i32, i32, i32
  }
  func.func @transform_5(%arg0: i32, %arg1: i32) -> (i32, i32, i32, i32) {
    %c0_i32 = arith.constant 0 : i32
    %c0_i32_0 = arith.constant 0 : i32
    %c0_i32_1 = arith.constant 0 : i32
    return %arg0, %c0_i32, %arg1, %c0_i32_0 : i32, i32, i32, i32
  }
  func.func @transform_6(%arg0: i32, %arg1: i32) -> (i32, i32, i32, i32) {
    %c0_i32 = arith.constant 0 : i32
    %c0_i32_0 = arith.constant 0 : i32
    %c0_i32_1 = arith.constant 0 : i32
    return %arg0, %c0_i32, %arg1, %c0_i32_0 : i32, i32, i32, i32
  }
}

</mosaic_0001>

<llo_original>
// kernel: tpu_custom_call.1
$region0: #{tpu_custom_call.1}
  #allocation0 [shape = 'u32[]', space=smem, size = 0x4, offset = 0x4, fixed_abs, tag = 'smem constant byte address 0x4 - core index']
  #allocation1 [shape = 'u32[144,128]{1,0:T(1,128)}', space=vmem, size = 0x12000, scoped, tag = 'internal scratch']
  %s0 = inlined_call_operand.hbm [shape: f32[2,8,32], index: 0, kind: input, shape index: {}]
  %s1 = inlined_call_operand.vmem [shape: f32[1,32], index: 1, kind: input, shape index: {}]
  %s2 = inlined_call_operand.vmem [shape: f32[1,32], index: 2, kind: input, shape index: {}]
  %s3 = inlined_call_operand.hbm [shape: bf16[32,96], index: 3, kind: input, shape index: {}]
  %s4 = inlined_call_operand.hbm [shape: bf16[2,4,8,8], index: 4, kind: output, shape index: {0}]
  %s5 = inlined_call_operand.hbm [shape: bf16[2,4,8,8], index: 5, kind: output, shape index: {1}]
  %s6 = inlined_call_operand.hbm [shape: bf16[2,4,8,8], index: 6, kind: output, shape index: {2}]
  %7 = xla_tuple %s4, %s5, %s6
  %s8 = sld [smem:[#allocation0]]
  $region73: #{tpu_custom_call.1} parent=0
    _
  %s10 = ssub.s32 1, %s8
  %s11 = scalar_select 0, %s10, %s8
  $region1: #{tpu_custom_call.1} parent=0
    #allocation2 [shape = 'u8[8192]{0}', space=vmem, size = 0x2000, scoped, tag = 'input window, operand 0']
    #allocation3 [shape = 's32[2]{0}', space=sflag, size = 0x8, scoped, tag = 'scoped memory for tpu_custom_call.1']
    #allocation4 [shape = 's32[2]{0}', space=sflag, size = 0x8, scoped, tag = 'scoped memory for tpu_custom_call.1']
    #allocation5 [shape = 'u8[8192]{0}', space=vmem, size = 0x2000, scoped, tag = 'input window, operand 3, single buffered']
    #allocation6 [shape = 's32[1]{0}', space=sflag, size = 0x4, scoped, tag = 'scoped memory for tpu_custom_call.1']
    #allocation7 [shape = 'u8[16384]{0}', space=vmem, size = 0x4000, scoped, tag = 'output window, operand 0']
    #allocation8 [shape = 'u8[16384]{0}', space=vmem, size = 0x4000, scoped, tag = 'output window, operand 1']
    #allocation9 [shape = 's32[2]{0}', space=sflag, size = 0x8, scoped, tag = 'scoped memory for tpu_custom_call.1']
    #allocation10 [shape = 'u8[16384]{0}', space=vmem, size = 0x4000, scoped, tag = 'output window, operand 2']
    %12 = vsyncpa [#allocation3], 0
    %s13 = scalar_lea.sflag [#allocation3], 1
    %14 = vsyncpa %s13, 0
    %15 = vsyncpa [#allocation6], 0
    %16 = vsyncpa [#allocation4], 0
    %s17 = scalar_lea.sflag [#allocation4], 1
    %18 = vsyncpa %s17, 0
    %19 = vsyncpa [#allocation9], 0
    %s20 = scalar_lea.sflag [#allocation9], 1
    %21 = vsyncpa %s20, 0
    loop: start=0, step=1, limit=4
    $region2: #{tpu_custom_call.1} parent=1 // loop_pre_header
      _
    $region3: #{tpu_custom_call.1} parent=1 // loop_header
      %s23 = sphi 0, %s27
      %p24 = scmp.ge.s32.totalorder %s23, 4
      %s30 = sphi 0, %s42
      %s31 = sphi 0, %s38
      %s32 = sphi 0, %s30
      %s33 = sphi 0, %s31
      %s34 = sphi 0, %s32
      %s35 = sphi 0, %s33
      %s47 = sphi 0, %s49
      %s50 = sphi 0, %s47
      %s51 = sphi 0, %s50
      %s67 = sphi 0, %s51
      %s71 = sphi 0, %s71
      %s73 = sphi 0, %s71
      %s74 = sphi 0, %s73
      %s88 = sphi 0, %s74
      %s92 = sphi 0, %s92
      %s94 = sphi 0, %s92
      %s95 = sphi 0, %s94
      %s109 = sphi 0, %s95
      %s113 = sphi 0, %s113
      %s115 = sphi 0, %s113
      %s116 = sphi 0, %s115
      %s130 = sphi 0, %s116
      %s138 = sphi 0, %s140
      %s141 = sphi 0, %s138
      %s142 = sphi 0, %s141
      %s158 = sphi 0, %s142
      %s166 = sphi 0, %s168
      %s169 = sphi 0, %s166
      %s170 = sphi 0, %s169
      %s186 = sphi 0, %s170
      %s194 = sphi 0, %s196
      %s197 = sphi 0, %s194
      %s198 = sphi 0, %s197
      %s214 = sphi 0, %s198
    $region4: #{tpu_custom_call.1} parent=1 // loop_header_branch
      %26 = sbr.rel (%p24) target = $region8
    $region5: #{tpu_custom_call.1} parent=1 // loop_body
      %s28 = ssub.s32 %s23, 1
      %s29 = ssub.s32 %s23, 2
      %s36 = sadd.s32 1, %s31
      %p37 = scmp.ge.s32.totalorder %s36, 1
      %s38 = scalar_select %p37, 0, %s36
      %s39 = sadd.s32 1, %s30
      %s40 = scalar_select %p37, %s39, %s30
      %p41 = scmp.ge.s32.totalorder %s40, 2
      %s42 = scalar_select %p41, 0, %s40
      %s43 = ssub.s32 %s30, %s42
      %s44 = ssub.s32 %s31, %s38
      %s45 = sor.u32 %s43, %s44
      %p46 = scmp.eq.s32.totalorder %s45, 0
      %s48 = sadd.s32 %s47, 1
      %s49 = scalar_select %p46, %s47, %s48
      %p52 = pneg %p46
      %p53 = scmp.eq.s32.totalorder %s23, 1
      %p54 = por %p52, %p53
      %p55 = scmp.ne.s32.totalorder %s47, %s50
      %p56 = scmp.eq.s32.totalorder %s23, 0
      %p57 = por %p55, %p56
      %p58 = scmp.ne.s32.totalorder %s47, %s50
      %p59 = scmp.eq.s32.totalorder %s28, 1
      %p60 = por %p58, %p59
      %p61 = scmp.ne.s32.totalorder %s50, %s51
      %p62 = scmp.eq.s32.totalorder %s28, 0
      %p63 = por %p61, %p62
      %p64 = scmp.ne.s32.totalorder %s50, %s51
      %p65 = scmp.eq.s32.totalorder %s29, 1
      %p66 = por %p64, %p65
      %p68 = scmp.ne.s32.totalorder %s51, %s67
      %p69 = scmp.eq.s32.totalorder %s29, 0
      %p70 = por %p68, %p69
      %s72 = sadd.s32 %s71, 1
      %p75 = scmp.eq.s32.totalorder %s23, 1
      %p76 = scmp.ne.s32.totalorder %s71, %s73
      %p77 = scmp.eq.s32.totalorder %s23, 0
      %p78 = por %p76, %p77
      %p79 = scmp.ne.s32.totalorder %s71, %s73
      %p80 = scmp.eq.s32.totalorder %s28, 1
      %p81 = por %p79, %p80
      %p82 = scmp.ne.s32.totalorder %s73, %s74
      %p83 = scmp.eq.s32.totalorder %s28, 0
      %p84 = por %p82, %p83
      %p85 = scmp.ne.s32.totalorder %s73, %s74
      %p86 = scmp.eq.s32.totalorder %s29, 1
      %p87 = por %p85, %p86
      %p89 = scmp.ne.s32.totalorder %s74, %s88
      %p90 = scmp.eq.s32.totalorder %s29, 0
      %p91 = por %p89, %p90
      %s93 = sadd.s32 %s92, 1
      %p96 = scmp.eq.s32.totalorder %s23, 1
      %p97 = scmp.ne.s32.totalorder %s92, %s94
      %p98 = scmp.eq.s32.totalorder %s23, 0
      %p99 = por %p97, %p98
      %p100 = scmp.ne.s32.totalorder %s92, %s94
      %p101 = scmp.eq.s32.totalorder %s28, 1
      %p102 = por %p100, %p101
      %p103 = scmp.ne.s32.totalorder %s94, %s95
      %p104 = scmp.eq.s32.totalorder %s28, 0
      %p105 = por %p103, %p104
      %p106 = scmp.ne.s32.totalorder %s94, %s95
      %p107 = scmp.eq.s32.totalorder %s29, 1
      %p108 = por %p106, %p107
      %p110 = scmp.ne.s32.totalorder %s95, %s109
      %p111 = scmp.eq.s32.totalorder %s29, 0
      %p112 = por %p110, %p111
      %s114 = sadd.s32 %s113, 1
      %p117 = scmp.eq.s32.totalorder %s23, 1
      %p118 = scmp.ne.s32.totalorder %s113, %s115
      %p119 = scmp.eq.s32.totalorder %s23, 0
      %p120 = por %p118, %p119
      %p121 = scmp.ne.s32.totalorder %s113, %s115
      %p122 = scmp.eq.s32.totalorder %s28, 1
      %p123 = por %p121, %p122
      %p124 = scmp.ne.s32.totalorder %s115, %s116
      %p125 = scmp.eq.s32.totalorder %s28, 0
      %p126 = por %p124, %p125
      %p127 = scmp.ne.s32.totalorder %s115, %s116
      %p128 = scmp.eq.s32.totalorder %s29, 1
      %p129 = por %p127, %p128
      %p131 = scmp.ne.s32.totalorder %s116, %s130
      %p132 = scmp.eq.s32.totalorder %s29, 0
      %p133 = por %p131, %p132
      %s134 = ssub.s32 %s30, %s42
      %s135 = ssub.s32 %s31, %s38
      %s136 = sor.u32 %s134, %s135
      %p137 = scmp.eq.s32.totalorder %s136, 0
      %s139 = sadd.s32 %s138, 1
      %s140 = scalar_select %p137, %s138, %s139
      %p143 = pneg %p137
      %p144 = scmp.eq.s32.totalorder %s23, 1
      %p145 = por %p143, %p144
      %p146 = scmp.ne.s32.totalorder %s138, %s141
      %p147 = scmp.eq.s32.totalorder %s23, 0
      %p148 = por %p146, %p147
      %p149 = scmp.ne.s32.totalorder %s138, %s141
      %p150 = scmp.eq.s32.totalorder %s28, 1
      %p151 = por %p149, %p150
      %p152 = scmp.ne.s32.totalorder %s141, %s142
      %p153 = scmp.eq.s32.totalorder %s28, 0
      %p154 = por %p152, %p153
      %p155 = scmp.ne.s32.totalorder %s141, %s142
      %p156 = scmp.eq.s32.totalorder %s29, 1
      %p157 = por %p155, %p156
      %p159 = scmp.ne.s32.totalorder %s142, %s158
      %p160 = scmp.eq.s32.totalorder %s29, 0
      %p161 = por %p159, %p160
      %s162 = ssub.s32 %s30, %s42
      %s163 = ssub.s32 %s31, %s38
      %s164 = sor.u32 %s162, %s163
      %p165 = scmp.eq.s32.totalorder %s164, 0
      %s167 = sadd.s32 %s166, 1
      %s168 = scalar_select %p165, %s166, %s167
      %p171 = pneg %p165
      %p172 = scmp.eq.s32.totalorder %s23, 1
      %p173 = por %p171, %p172
      %p174 = scmp.ne.s32.totalorder %s166, %s169
      %p175 = scmp.eq.s32.totalorder %s23, 0
      %p176 = por %p174, %p175
      %p177 = scmp.ne.s32.totalorder %s166, %s169
      %p178 = scmp.eq.s32.totalorder %s28, 1
      %p179 = por %p177, %p178
      %p180 = scmp.ne.s32.totalorder %s169, %s170
      %p181 = scmp.eq.s32.totalorder %s28, 0
      %p182 = por %p180, %p181
      %p183 = scmp.ne.s32.totalorder %s169, %s170
      %p184 = scmp.eq.s32.totalorder %s29, 1
      %p185 = por %p183, %p184
      %p187 = scmp.ne.s32.totalorder %s170, %s186
      %p188 = scmp.eq.s32.totalorder %s29, 0
      %p189 = por %p187, %p188
      %s190 = ssub.s32 %s30, %s42
      %s191 = ssub.s32 %s31, %s38
      %s192 = sor.u32 %s190, %s191
      %p193 = scmp.eq.s32.totalorder %s192, 0
      %s195 = sadd.s32 %s194, 1
      %s196 = scalar_select %p193, %s194, %s195
      %p199 = pneg %p193
      %p200 = scmp.eq.s32.totalorder %s23, 1
      %p201 = por %p199, %p200
      %p202 = scmp.ne.s32.totalorder %s194, %s197
      %p203 = scmp.eq.s32.totalorder %s23, 0
      %p204 = por %p202, %p203
      %p205 = scmp.ne.s32.totalorder %s194, %s197
      %p206 = scmp.eq.s32.totalorder %s28, 1
      %p207 = por %p205, %p206
      %p208 = scmp.ne.s32.totalorder %s197, %s198
      %p209 = scmp.eq.s32.totalorder %s28, 0
      %p210 = por %p208, %p209
      %p211 = scmp.ne.s32.totalorder %s197, %s198
      %p212 = scmp.eq.s32.totalorder %s29, 1
      %p213 = por %p211, %p212
      %p215 = scmp.ne.s32.totalorder %s198, %s214
      %p216 = scmp.eq.s32.totalorder %s29, 0
      %p217 = por %p215, %p216
      %p218 = scmp.le.s32.totalorder 1, %s23
      %p219 = scmp.lt.s32.totalorder %s23, 3
      %p220 = pnand %p218, %p219
      %p221 = pneg %p220
      // Predicated region
      $region9: #{tpu_custom_call.1} parent=5 // pred_check
        _
      $region10: #{tpu_custom_call.1} parent=5 // pred_check_branch
        %223 = sbr.rel (%p220) target = $region12
      $region11: #{tpu_custom_call.1} parent=5 // pred_region
        %s224 = ssub.s32 %s23, 1
        // Predicated region
        $region13: #{tpu_custom_call.1} parent=11 // pred_check
          %p225 = pneg %p84
        $region14: #{tpu_custom_call.1} parent=11 // pred_check_branch
          %227 = sbr.rel (%p225) target = $region16
        $region15: #{tpu_custom_call.1} parent=11 // pred_region
          _
        $region16: #{tpu_custom_call.1} parent=11 // pred_fallthru
          _
        // Predicated region
        $region17: #{tpu_custom_call.1} parent=11 // pred_check
          %p228 = pneg %p105
        $region18: #{tpu_custom_call.1} parent=11 // pred_check_branch
          %230 = sbr.rel (%p228) target = $region20
        $region19: #{tpu_custom_call.1} parent=11 // pred_region
          _
        $region20: #{tpu_custom_call.1} parent=11 // pred_fallthru
          _
        // Predicated region
        $region21: #{tpu_custom_call.1} parent=11 // pred_check
          %p231 = pneg %p126
        $region22: #{tpu_custom_call.1} parent=11 // pred_check_branch
          %233 = sbr.rel (%p231) target = $region24
        $region23: #{tpu_custom_call.1} parent=11 // pred_region
          %s235 = ssub.s32 256, 256
          %236 = vsyncadd [#allocation6], %s235
          %s237 = sshll.u32 [#allocation5], 4
          %s238 = int_to_ptr.vmem [resolvable:$true] %s237
          %243 = dma.hbm_to_vmem [thread:$0]  %s3, 256, %s238, [#allocation6], 64, 64, 4
        $region24: #{tpu_custom_call.1} parent=11 // pred_fallthru
          _
      $region12: #{tpu_custom_call.1} parent=5 // pred_fallthru
        _
      %p244 = scmp.lt.s32.totalorder %s23, 2
      // Predicated region
      $region25: #{tpu_custom_call.1} parent=5 // pred_check
        %p245 = pneg %p244
      $region26: #{tpu_custom_call.1} parent=5 // pred_check_branch
        %247 = sbr.rel (%p245) target = $region28
      $region27: #{tpu_custom_call.1} parent=5 // pred_region
        // Predicated region
        $region29: #{tpu_custom_call.1} parent=27 // pred_check
          %p248 = pneg %p57
        $region30: #{tpu_custom_call.1} parent=27 // pred_check_branch
          %250 = sbr.rel (%p248) target = $region32
        $region31: #{tpu_custom_call.1} parent=27 // pred_region
          %s251 = sand.u32 %s47, 1
          %s252 = scalar_lea.sflag [#allocation3], %s251
          %s253 = sand.u32 %s47, 1
          %s254 = smul.addr %s253, 8
          %s255 = scalar_lea.vmem [#allocation2], %s254
          %s257 = ssub.s32 128, 128
          %258 = vsyncadd %s252, %s257
          %s259 = sadd.s32 %s31, %s30
          %s260 = smul.addr %s259, 128
          %s261 = scalar_lea.hbm %s0, %s260
          %s263 = sshll.u32 %s255, 4
          %s264 = int_to_ptr.vmem [resolvable:$true] %s263
          %266 = dma.hbm_to_vmem [thread:$0]  %s261, 128, %s264, %s252
        $region32: #{tpu_custom_call.1} parent=27 // pred_fallthru
          _
      $region28: #{tpu_custom_call.1} parent=5 // pred_fallthru
        _
      %p267 = scmp.le.s32.totalorder 1, %s23
      %p268 = scmp.lt.s32.totalorder %s23, 3
      %p269 = pnand %p267, %p268
      %p270 = pneg %p269
      // Predicated region
      $region33: #{tpu_custom_call.1} parent=5 // pred_check
        _
      $region34: #{tpu_custom_call.1} parent=5 // pred_check_branch
        %272 = sbr.rel (%p269) target = $region36
      $region35: #{tpu_custom_call.1} parent=5 // pred_region
        %s273 = ssub.s32 %s23, 1
        %s274 = sand.u32 %s50, 1
        %s275 = scalar_lea.sflag [#allocation3], %s274
        %s276 = sand.u32 %s50, 1
        %s277 = smul.addr %s276, 8
        %s278 = scalar_lea.vmem [#allocation2], %s277
        // Predicated region
        $region37: #{tpu_custom_call.1} parent=35 // pred_check
          %p279 = pneg %p63
        $region38: #{tpu_custom_call.1} parent=35 // pred_check_branch
          %281 = sbr.rel (%p279) target = $region40
        $region39: #{tpu_custom_call.1} parent=35 // pred_region
          %282 = dma.done %s275, 128
        $region40: #{tpu_custom_call.1} parent=35 // pred_fallthru
          _
        // Predicated region
        $region41: #{tpu_custom_call.1} parent=35 // pred_check
          %p283 = pneg %p126
        $region42: #{tpu_custom_call.1} parent=35 // pred_check_branch
          %285 = sbr.rel (%p283) target = $region44
        $region43: #{tpu_custom_call.1} parent=35 // pred_region
          %286 = dma.done [#allocation6], 256
        $region44: #{tpu_custom_call.1} parent=35 // pred_fallthru
          _
        %s287 = sand.u32 %s50, 1
        %s288 = scalar_lea.sflag [#allocation3], %s287
        %s289 = sand.u32 %s50, 1
        %s290 = smul.addr %s289, 8
        %s291 = scalar_lea.vmem [#allocation2], %s290
        %p292 = pneg %p63
        %p293 = pneg %p60
        %p294 = pneg %p84
        %p295 = pneg %p81
        %p296 = pneg %p105
        %p297 = pneg %p102
        %p298 = pneg %p126
        %p299 = pneg %p123
        %p300 = pneg %p154
        %p301 = pneg %p151
        %s302 = sand.u32 %s141, 1
        %s303 = scalar_lea.sflag [#allocation4], %s302
        %s304 = sand.u32 %s141, 1
        %s305 = smul.addr %s304, 16
        %s306 = scalar_lea.vmem [#allocation7], %s305
        %p307 = pneg %p182
        %p308 = pneg %p179
        %s309 = sand.u32 %s28, 1
        %s310 = scalar_lea.sflag [#allocation9], %s309
        %s311 = sand.u32 %s169, 1
        %s312 = smul.addr %s311, 16
        %s313 = scalar_lea.vmem [#allocation8], %s312
        %p314 = pneg %p210
        %p315 = pneg %p207
        %s316 = sand.u32 %s28, 1
        %s317 = scalar_lea.sflag [#allocation9], %s316
        %s318 = sand.u32 %s197, 1
        %s319 = smul.addr %s318, 16
        %s320 = scalar_lea.vmem [#allocation10], %s319
        %v322 = vld [vmem:[%s278] sm:$0xff]
        %v323 = vld [vmem:[%s1] sm:$0x1]
        %v324 = vld [vmem:[%s2] sm:$0x1]
        %vm325 = vcmask 261120
        %v326 = vsel %vm325, %v322, 0.0
        %327 = vadd.xlane.f32.xlu0 %v326
        %v328 = vpop.xlane.xlu0 %327
        %v329 = vrcp.pop 32.0
        %v330 = vmul.f32 %v328, %v329
        %v331 = vsub.f32 %v322, %v330
        %v332 = vmul.f32 %v331, %v331
        %v333 = vsel %vm325, %v332, 0.0
        %334 = vadd.xlane.f32.xlu0 %v333
        %v335 = vpop.xlane.xlu0 %334
        %v336 = vmul.f32 %v335, %v329
        %v337 = vadd.f32 %v336, 1e-05
        %v338 = vrsqrt.pop %v337
        %v339 = vmul.f32 %v331, %v338
        %v341 = vlaneseq
        %v342 = vshrl.u32 %v341, 7
        %v343 = vsub.s32 0, %v342
        %v344 = vrot.slane %v323, %v343
        %v346 = vmul.f32 %v339, %v344
        %v348 = vlaneseq
        %v349 = vshrl.u32 %v348, 7
        %v350 = vsub.s32 0, %v349
        %v351 = vrot.slane %v324, %v350
        %v353 = vadd.f32 %v346, %v351
        %v354 = vpack.c.bf16 %v353, %v353
        %v355 = vld [vmem:[#allocation5] sm:$0xf]
        %v356 = vld [vmem:[#allocation5 + $0x4] sm:$0xf]
        %v357 = vld [vmem:[#allocation5 + $0x8] sm:$0xf]
        %v358 = vld [vmem:[#allocation5 + $0xc] sm:$0xf]
        %v363 = vunpack.c.l.b16 %v355
        %v364 = vunpack.c.l.b16 %v356
        %v365 = vunpack.c.l.b16 %v357
        %v366 = vunpack.c.l.b16 %v358
        %v367 = vpack.c.b16 %v364, %v363
        %v368 = vpack.c.b16 %v366, %v365
        %v372 = vsel %vm325, %v354, 0
        %374 = vmatprep.subr.bf16.mxu0 0
        %375 = vmatpush1.bf16.msra.mxu0 %v367
        %376 = vmatprep.subr.bf16.mxu0 0
        %377 = vmatpush1.bf16.msra.mxu0 %v368
        %378 = vmatprep.subr.bf16.mxu0 0
        %379 = vmatpush1.bf16.msra.mxu0 0
        %380 = vmatprep.subr.bf16.mxu0 0
        %381 = vmatpush1.bf16.msra.mxu0 0
        %382 = vmatprep.subr.bf16.mxu0 0
        %383 = vmatpush1.bf16.msra.mxu0 0
        %384 = vmatprep.subr.bf16.mxu0 0
        %385 = vmatpush1.bf16.msra.mxu0 0
        %386 = vmatprep.subr.bf16.mxu0 0
        %387 = vmatpush1.bf16.msra.mxu0 0
        %388 = vmatprep.subr.bf16.mxu0 0
        %389 = vmatpush1.bf16.msra.mxu0 0
        %390 = vmatprep.subr.bf16.mxu0 0
        %391 = vmatpush1.bf16.msra.mxu0 0
        %392 = vmatprep.subr.bf16.mxu0 0
        %393 = vmatpush1.bf16.msra.mxu0 0
        %394 = vmatprep.subr.bf16.mxu0 0
        %395 = vmatpush1.bf16.msra.mxu0 0
        %396 = vmatprep.subr.bf16.mxu0 0
        %397 = vmatpush1.bf16.msra.mxu0 0
        %398 = vmatprep.subr.bf16.mxu0 0
        %399 = vmatpush1.bf16.msra.mxu0 0
        %400 = vmatprep.subr.bf16.mxu0 0
        %401 = vmatpush1.bf16.msra.mxu0 0
        %402 = vmatprep.subr.bf16.mxu0 0
        %403 = vmatpush1.bf16.msra.mxu0 0
        %404 = vmatprep.subr.bf16.mxu0 0
        %405 = vmatpush1.bf16.msra.mxu0 0
        %406 = vmatprep.mubr.bf16.mxu0 0
        %407 = vmatmul.mubr.bf16.gmra.mrb[0].mxu0 %v372
        %v408 = vpop.f32.mrb[0].mxu0
        %v409 = vadd.f32 0.0, %v408
        %v410 = vpop.f32.mrb[0].mxu0
        %v411 = vpop.f32.mrb[0].mxu0
        %v412 = vpop.f32.mrb[0].mxu0
        %413 = vdwg.mxu0
        %v414 = vmul.f32 %v409, 0.35355338
        %v415 = vpack.c.bf16 %v414, %v414
        %vm416 = vcmask 60416
        %417 = vst.msk [vmem:[%s306] sm:$0xf] %vm416, %v415
        %v418 = vpack.c.bf16 %v409, %v409
        %v420 = vunpack.c.l.b16 %v418
        %v421 = vpack.c.b16 %v420, %v420
        %422 = vrot.lane.b32.xlu0 %v421, 96
        %v423 = vpop.permute.xlu0 %422
        %425 = vst.msk [vmem:[%s313] sm:$0xf] %vm416, %v423
        %426 = vrot.lane.b32.xlu0 %v421, 64
        %v427 = vpop.permute.xlu0 %426
        %429 = vst.msk [vmem:[%s320] sm:$0xf] %vm416, %v427
        %v431 = vunpack.c.l.b16 %v415
        %v432 = vpack.c.b16 %v431, %v431
        %433 = vrot.lane.b32.xlu0 %v432, 120
        %v434 = vpop.permute.xlu0 %433
        %s436 = scalar_lea.vmem %s306, 4 [#allocation7]
        %437 = vst.msk [vmem:[%s436] sm:$0xf] %vm416, %v434
        %438 = vrot.lane.b32.xlu0 %v421, 88
        %v439 = vpop.permute.xlu0 %438
        %s441 = scalar_lea.vmem %s313, 4 [#allocation8]
        %442 = vst.msk [vmem:[%s441] sm:$0xf] %vm416, %v439
        %443 = vrot.lane.b32.xlu0 %v421, 56
        %v444 = vpop.permute.xlu0 %443
        %s446 = scalar_lea.vmem %s320, 4 [#allocation10]
        %447 = vst.msk [vmem:[%s446] sm:$0xf] %vm416, %v444
        %448 = vrot.lane.b32.xlu0 %v432, 112
        %v449 = vpop.permute.xlu0 %448
        %s451 = scalar_lea.vmem %s306, 8 [#allocation7]
        %452 = vst.msk [vmem:[%s451] sm:$0xf] %vm416, %v449
        %453 = vrot.lane.b32.xlu0 %v421, 80
        %v454 = vpop.permute.xlu0 %453
        %s456 = scalar_lea.vmem %s313, 8 [#allocation8]
        %457 = vst.msk [vmem:[%s456] sm:$0xf] %vm416, %v454
        %458 = vrot.lane.b32.xlu0 %v421, 48
        %v459 = vpop.permute.xlu0 %458
        %s461 = scalar_lea.vmem %s320, 8 [#allocation10]
        %462 = vst.msk [vmem:[%s461] sm:$0xf] %vm416, %v459
        %463 = vrot.lane.b32.xlu0 %v432, 104
        %v464 = vpop.permute.xlu0 %463
        %s466 = scalar_lea.vmem %s306, 12 [#allocation7]
        %467 = vst.msk [vmem:[%s466] sm:$0xf] %vm416, %v464
        %468 = vrot.lane.b32.xlu0 %v421, 72
        %v469 = vpop.permute.xlu0 %468
        %s471 = scalar_lea.vmem %s313, 12 [#allocation8]
        %472 = vst.msk [vmem:[%s471] sm:$0xf] %vm416, %v469
        %473 = vrot.lane.b32.xlu0 %v421, 40
        %v474 = vpop.permute.xlu0 %473
        %s476 = scalar_lea.vmem %s320, 12 [#allocation10]
        %477 = vst.msk [vmem:[%s476] sm:$0xf] %vm416, %v474
        %s478 = sand.u32 %s141, 1
        %s479 = scalar_lea.sflag [#allocation4], %s478
        %s480 = sand.u32 %s141, 1
        %s481 = smul.addr %s480, 16
        %s482 = scalar_lea.vmem [#allocation7], %s481
        %s483 = sand.u32 %s28, 1
        %s484 = scalar_lea.sflag [#allocation9], %s483
        %s485 = sand.u32 %s169, 1
        %s486 = smul.addr %s485, 16
        %s487 = scalar_lea.vmem [#allocation8], %s486
        %s488 = sand.u32 %s28, 1
        %s489 = scalar_lea.sflag [#allocation9], %s488
        %s490 = sand.u32 %s197, 1
        %s491 = smul.addr %s490, 16
        %s492 = scalar_lea.vmem [#allocation10], %s491
        // Predicated region
        $region45: #{tpu_custom_call.1} parent=35 // pred_check
          %p493 = pneg %p151
        $region46: #{tpu_custom_call.1} parent=35 // pred_check_branch
          %495 = sbr.rel (%p493) target = $region48
        $region47: #{tpu_custom_call.1} parent=35 // pred_region
          %s497 = ssub.s32 256, 256
          %498 = vsyncadd %s479, %s497
          %s499 = smul.addr %s32, 4
          %s500 = sadd.s32 %s33, %s499
          %s501 = smul.addr %s500, 64
          %s502 = scalar_lea.hbm %s4, %s501
          %s503 = sshll.u32 %s482, 4
          %s504 = int_to_ptr.vmem [resolvable:$true] %s503
          %509 = dma.vmem_to_hbm [thread:$0]  %s504, 256, %s502, %s479, 64, 64, 4
        $region48: #{tpu_custom_call.1} parent=35 // pred_fallthru
          _
        // Predicated region
        $region49: #{tpu_custom_call.1} parent=35 // pred_check
          %p510 = pneg %p179
        $region50: #{tpu_custom_call.1} parent=35 // pred_check_branch
          %512 = sbr.rel (%p510) target = $region52
        $region51: #{tpu_custom_call.1} parent=35 // pred_region
          %s514 = ssub.s32 256, 256
          %515 = vsyncadd %s484, %s514
          %s516 = smul.addr %s32, 4
          %s517 = sadd.s32 %s33, %s516
          %s518 = smul.addr %s517, 64
          %s519 = scalar_lea.hbm %s5, %s518
          %s520 = sshll.u32 %s487, 4
          %s521 = int_to_ptr.vmem [resolvable:$true] %s520
          %526 = dma.vmem_to_hbm [thread:$0]  %s521, 256, %s519, %s484, 64, 64, 4
        $region52: #{tpu_custom_call.1} parent=35 // pred_fallthru
          _
        // Predicated region
        $region53: #{tpu_custom_call.1} parent=35 // pred_check
          %p527 = pneg %p207
        $region54: #{tpu_custom_call.1} parent=35 // pred_check_branch
          %529 = sbr.rel (%p527) target = $region56
        $region55: #{tpu_custom_call.1} parent=35 // pred_region
          %s531 = ssub.s32 256, 256
          %532 = vsyncadd %s489, %s531
          %s533 = smul.addr %s32, 4
          %s534 = sadd.s32 %s33, %s533
          %s535 = smul.addr %s534, 64
          %s536 = scalar_lea.hbm %s6, %s535
          %s537 = sshll.u32 %s492, 4
          %s538 = int_to_ptr.vmem [resolvable:$true] %s537
          %543 = dma.vmem_to_hbm [thread:$0]  %s538, 256, %s536, %s489, 64, 64, 4
        $region56: #{tpu_custom_call.1} parent=35 // pred_fallthru
          _
      $region36: #{tpu_custom_call.1} parent=5 // pred_fallthru
        _
      %p544 = scmp.le.s32.totalorder 2, %s23
      // Predicated region
      $region57: #{tpu_custom_call.1} parent=5 // pred_check
        %p545 = pneg %p544
      $region58: #{tpu_custom_call.1} parent=5 // pred_check_branch
        %547 = sbr.rel (%p545) target = $region60
      $region59: #{tpu_custom_call.1} parent=5 // pred_region
        %s548 = ssub.s32 %s23, 2
        // Predicated region
        $region61: #{tpu_custom_call.1} parent=59 // pred_check
          %p549 = pneg %p157
        $region62: #{tpu_custom_call.1} parent=59 // pred_check_branch
          %551 = sbr.rel (%p549) target = $region64
        $region63: #{tpu_custom_call.1} parent=59 // pred_region
          %s552 = sand.u32 %s142, 1
          %s553 = scalar_lea.sflag [#allocation4], %s552
          %s554 = sand.u32 %s142, 1
          %s555 = smul.addr %s554, 16
          %s556 = scalar_lea.vmem [#allocation7], %s555
          %557 = dma.done %s553, 256
        $region64: #{tpu_custom_call.1} parent=59 // pred_fallthru
          _
        // Predicated region
        $region65: #{tpu_custom_call.1} parent=59 // pred_check
          %p558 = pneg %p185
        $region66: #{tpu_custom_call.1} parent=59 // pred_check_branch
          %560 = sbr.rel (%p558) target = $region68
        $region67: #{tpu_custom_call.1} parent=59 // pred_region
          %s561 = sand.u32 %s29, 1
          %s562 = scalar_lea.sflag [#allocation9], %s561
          %s563 = sand.u32 %s170, 1
          %s564 = smul.addr %s563, 16
          %s565 = scalar_lea.vmem [#allocation8], %s564
          %566 = dma.done %s562, 256
        $region68: #{tpu_custom_call.1} parent=59 // pred_fallthru
          _
        // Predicated region
        $region69: #{tpu_custom_call.1} parent=59 // pred_check
          %p567 = pneg %p213
        $region70: #{tpu_custom_call.1} parent=59 // pred_check_branch
          %569 = sbr.rel (%p567) target = $region72
        $region71: #{tpu_custom_call.1} parent=59 // pred_region
          %s570 = sand.u32 %s29, 1
          %s571 = scalar_lea.sflag [#allocation9], %s570
          %s572 = sand.u32 %s198, 1
          %s573 = smul.addr %s572, 16
          %s574 = scalar_lea.vmem [#allocation10], %s573
          %575 = dma.done %s571, 256
        $region72: #{tpu_custom_call.1} parent=59 // pred_fallthru
          _
      $region60: #{tpu_custom_call.1} parent=5 // pred_fallthru
        _
    $region6: #{tpu_custom_call.1} parent=1 // loop_footer
      %s27 = sadd.s32 1, %s23
    $region7: #{tpu_custom_call.1} parent=1 // loop_footer_branch
      %22 = sbr.rel target = $region3
    $region8: #{tpu_custom_call.1} parent=1 // loop_exit
      _
    %576 = vsyncpa [#allocation3], 1
    %s577 = scalar_lea.sflag [#allocation3], 1
    %578 = vsyncpa %s577, 1
    %579 = vsyncpa [#allocation6], 1
    %580 = vsyncpa [#allocation4], 1
    %s581 = scalar_lea.sflag [#allocation4], 1
    %582 = vsyncpa %s581, 1
    %583 = vsyncpa [#allocation9], 1
    %s584 = scalar_lea.sflag [#allocation9], 1
    %585 = vsyncpa %s584, 1

</llo_original>
